<compile_context>
chip_gen: v6e
topology: v6e:2x2x1
jax: 0.10.0
libtpu: 0.0.40
codegen_flags: <defaults>
</compile_context>

<pallas_src>
import jax
import jax.numpy as jnp
from jax.experimental import pallas as pl
from jax.experimental.pallas import tpu as pltpu

_LANES = 128
_DEFAULT_TILE_BYTES = 4 * 1024 * 1024   # v5e/v6e: already >=95% of HBM roofline
_DEFAULT_VMEM_LIMIT = 32 * 1024 * 1024  # raises v5e's 16 MiB default scoped limit
_V7X_TILE_BYTES = 8 * 1024 * 1024       # v7x: 3.2 TB/s HBM -> halve per-step tax
_V7X_VMEM_LIMIT = 40 * 1024 * 1024      # 8 MiB * 2buf * (in+out) = 32 MiB resident


def _gauss_kernel(params_ref, x_ref, o_ref):
    mu = params_ref[0]      # SMEM scalar
    coef = params_ref[1]    # SMEM scalar: -1 / (2 * sigma^2), precomputed
    d = x_ref[...].astype(jnp.float32) - mu
    # One VPU mul chain + one EUP exp per element; cast on the store path.
    o_ref[...] = jnp.exp(d * d * coef).astype(o_ref.dtype)


def _tile_budget():
    """(max_tile_bytes, vmem_limit_bytes), adapted to the local chip."""
    try:
        vmem = pltpu.get_tpu_info().vmem_capacity_bytes
    except Exception:
        vmem = None
    if vmem is not None and vmem <= 96 * 1024 * 1024:
        # v7x-class part (64 MiB VMEM, very fast HBM): bigger tiles cut the
        # per-grid-step overhead tax; 32 MiB resident fits a 40 MiB limit.
        return _V7X_TILE_BYTES, _V7X_VMEM_LIMIT
    # v5e/v6e (128 MiB physical VMEM): conservative values are already optimal.
    return _DEFAULT_TILE_BYTES, _DEFAULT_VMEM_LIMIT


def _choose_layout(n, itemsize, max_tile_bytes):
    """Pick (rows, tile_rows) for a flat length-n array laid out as (rows, 128)."""
    sublane = max(8, 32 // itemsize)        # f32: 8, bf16/f16: 16, int8/fp8: 32
    rows = -(-n // _LANES)                  # cdiv; true row count, NOT tile-rounded
    max_rows = max(
        sublane, (max_tile_bytes // (_LANES * itemsize)) // sublane * sublane
    )
    # Whole slab in one block when it fits (block == full dims is always legal);
    # otherwise sublane-aligned tiles and let Pallas mask the ragged last block.
    tile_rows = rows if rows <= max_rows else max_rows
    return rows, tile_rows


def gauss_memb_func(x, mu, sigma):
    """Elementwise Gaussian membership function, matching GaussMembFunc.forward."""
    orig_shape = x.shape
    out_dtype = x.dtype if jnp.issubdtype(x.dtype, jnp.floating) else jnp.float32
    if not jnp.issubdtype(x.dtype, jnp.floating):
        x = x.astype(jnp.float32)

    max_tile_bytes, vmem_limit = _tile_budget()
    flat = x.reshape(-1)
    n = flat.shape[0]
    itemsize = jnp.dtype(x.dtype).itemsize
    rows, tile_rows = _choose_layout(n, itemsize, max_tile_bytes)

    n_lane_pad = rows * _LANES
    if n_lane_pad != n:
        # Pad only to the next lane multiple (< 128 extra elements).
        # TODO(synk): mask the ragged lane tail in-kernel (n via SMEM scalar +
        # pltpu.store mask) to drop this pad/slice copy entirely.
        flat = jnp.pad(flat, (0, n_lane_pad - n))
    x2d = flat.reshape(rows, _LANES)  # lane-dense 2D slab

    mu_f = jnp.asarray(mu, jnp.float32).reshape(())
    sigma_f = jnp.asarray(sigma, jnp.float32).reshape(())
    # NOTE: sigma == 0 gives coef = -inf (0 / NaN at d == 0), mirroring the
    # torch divide-by-zero behavior.
    params = jnp.stack([mu_f, -1.0 / (2.0 * sigma_f * sigma_f)])  # (2,) f32

    grid = (pl.cdiv(rows, tile_rows),)
    out2d = pl.pallas_call(
        _gauss_kernel,
        out_shape=jax.ShapeDtypeStruct((rows, _LANES), out_dtype),
        grid_spec=pltpu.PrefetchScalarGridSpec(
            num_scalar_prefetch=0,
            grid=grid,
            in_specs=[
                pl.BlockSpec(memory_space=pltpu.SMEM),                # (mu, coef)
                pl.BlockSpec((tile_rows, _LANES), lambda i: (i, 0)),  # x tile
            ],
            out_specs=pl.BlockSpec((tile_rows, _LANES), lambda i: (i, 0)),
        ),
        compiler_params=pltpu.CompilerParams(
            # TODO(synk): on v7x, verify dual-TC sharding (pltpu.CORE_PARALLEL /
            # pl.core_map) actually engages; plain "parallel" is safe everywhere.
            dimension_semantics=("parallel",),
            vmem_limit_bytes=vmem_limit,
        ),
    )(params, x2d)

    flat_out = out2d.reshape(-1)
    if n_lane_pad != n:
        flat_out = flat_out[:n]
    return flat_out.reshape(orig_shape)


if __name__ == "__main__":
    key = jax.random.PRNGKey(0)
    k1, k2, k3 = jax.random.split(key, 3)

    # Deterministic scalar parameters (module __init__ takes scalars).
    mu = 0.5
    sigma = 1.25

    # Small NCHW-style input consistent with an elementwise membership function.
    x = jax.random.normal(k1, (2, 4, 16, 16), dtype=jnp.float32)
    out = jax.block_until_ready(gauss_memb_func(x, mu, sigma))
    ref = jnp.exp(-jnp.square(x - mu) / (2.0 * sigma ** 2))
    assert out.shape == x.shape and out.dtype == x.dtype
    assert jnp.allclose(out, ref, atol=1e-6, rtol=1e-6)

    # Ragged size (n % 128 != 0) exercises the tiny lane-pad path.
    x_r = jax.random.normal(k2, (3, 5, 7), dtype=jnp.float32)
    out_r = jax.block_until_ready(gauss_memb_func(x_r, mu, sigma))
    ref_r = jnp.exp(-jnp.square(x_r - mu) / (2.0 * sigma ** 2))
    assert out_r.shape == x_r.shape
    assert jnp.allclose(out_r, ref_r, atol=1e-6, rtol=1e-6)

    # bf16 input exercises the dtype-aware sublane rounding / cast-on-store path.
    x_b = jax.random.normal(k3, (2, 8, 32), dtype=jnp.float32).astype(jnp.bfloat16)
    out_b = jax.block_until_ready(gauss_memb_func(x_b, mu, sigma))
    ref_b = jnp.exp(
        -jnp.square(x_b.astype(jnp.float32) - mu) / (2.0 * sigma ** 2)
    ).astype(jnp.bfloat16)
    assert out_b.shape == x_b.shape and out_b.dtype == jnp.bfloat16
    assert jnp.allclose(
        out_b.astype(jnp.float32), ref_b.astype(jnp.float32), atol=1e-2, rtol=1e-2
    )

    print("KERNEL_OK")
</pallas_src>

<mosaic_0001>
module attributes {stable_mosaic.version = 11 : i64} {
  func.func @_gauss_kernel(%arg0: i32, %arg1: memref<2xf32, #tpu.memory_space<smem>>, %arg2: memref<16x128xf32, #tpu.memory_space<vmem>>, %arg3: memref<16x128xf32, #tpu.memory_space<vmem>>) attributes {dimension_semantics = [#tpu.dimension_semantics<parallel>], iteration_bounds = array<i64: 1>, scalar_prefetch = 0 : i64, scratch_operands = 0 : i64, tpu.core_type = #tpu.core_type<tc>, window_params = [{transform_indices = @transform_0, window_bounds = array<i64: 2>}, {transform_indices = @transform_1, window_bounds = array<i64: 16, 128>}, {transform_indices = @transform_2, window_bounds = array<i64: 16, 128>}]} {
    %c0 = arith.constant 0 : index
    %0 = memref.load %arg1[%c0] : memref<2xf32, #tpu.memory_space<smem>>
    %c1 = arith.constant 1 : index
    %1 = memref.load %arg1[%c1] : memref<2xf32, #tpu.memory_space<smem>>
    %c0_0 = arith.constant 0 : index
    %c0_1 = arith.constant 0 : index
    %2 = vector.load %arg2[%c0_0, %c0_1] : memref<16x128xf32, #tpu.memory_space<vmem>>, vector<16x128xf32>
    %3 = vector.broadcast %0 : f32 to vector<16x128xf32>
    %4 = arith.subf %2, %3 : vector<16x128xf32>
    %5 = arith.mulf %4, %4 : vector<16x128xf32>
    %6 = vector.broadcast %1 : f32 to vector<16x128xf32>
    %7 = arith.mulf %5, %6 : vector<16x128xf32>
    %8 = math.exp %7 : vector<16x128xf32>
    %c0_2 = arith.constant 0 : index
    %c0_3 = arith.constant 0 : index
    %9 = vector.load %arg3[%c0_2, %c0_3] : memref<16x128xf32, #tpu.memory_space<vmem>>, vector<16x128xf32>
    tpu.vector_store %arg3[%c0_2, %c0_3], %8 {strides = array<i32>} : memref<16x128xf32, #tpu.memory_space<vmem>>, vector<16x128xf32>,
    return
  }
  func.func @transform_0(%arg0: i32) -> i32 {
    %c0_i32 = arith.constant 0 : i32
    %c0_i32_0 = arith.constant 0 : i32
    return %c0_i32 : i32
  }
  func.func @transform_1(%arg0: i32) -> (i32, i32) {
    %c0_i32 = arith.constant 0 : i32
    %c0_i32_0 = arith.constant 0 : i32
    return %arg0, %c0_i32 : i32, i32
  }
  func.func @transform_2(%arg0: i32) -> (i32, i32) {
    %c0_i32 = arith.constant 0 : i32
    %c0_i32_0 = arith.constant 0 : i32
    return %arg0, %c0_i32 : i32, i32
  }
}

</mosaic_0001>

<llo_original>
// kernel: tpu_custom_call.1
$region0: #{tpu_custom_call.1}
  #allocation0 [shape = 'u32[]', space=smem, size = 0x4, offset = 0x4, fixed_abs, tag = 'smem constant byte address 0x4 - core index']
  #allocation1 [shape = 'u32[144,128]{1,0:T(1,128)}', space=vmem, size = 0x12000, scoped, tag = 'internal scratch']
  %s0 = inlined_call_operand.hbm [shape: f32[2], index: 0, kind: input, shape index: {}]
  %s1 = inlined_call_operand.hbm [shape: f32[16,128], index: 1, kind: input, shape index: {}]
  %s2 = inlined_call_operand.hbm [shape: f32[16,128], index: 2, kind: output, shape index: {}]
  %s3 = sld [smem:[#allocation0]]
  $region26: #{tpu_custom_call.1} parent=0
    _
  %s5 = ssub.s32 1, %s3
  %s6 = scalar_select 0, %s5, %s3
  $region1: #{tpu_custom_call.1} parent=0
    #allocation2 [shape = 'u8[512]{0}', space=smem, size = 0x200, scoped, tag = 'input window, operand 0, single buffered']
    #allocation3 [shape = 's32[1]{0}', space=sflag, size = 0x4, scoped, tag = 'scoped memory for tpu_custom_call.1']
    #allocation4 [shape = 's32[1]{0}', space=sflag, size = 0x4, scoped, tag = 'scoped memory for tpu_custom_call.1']
    #allocation5 [shape = 's32[1]{0}', space=sflag, size = 0x4, scoped, tag = 'scoped memory for tpu_custom_call.1']
    #allocation6 [shape = 'u8[8192]{0}', space=vmem, size = 0x2000, scoped, tag = 'input window, operand 1, single buffered']
    #allocation7 [shape = 'u8[8192]{0}', space=vmem, size = 0x2000, scoped, tag = 'output window, operand 0, single buffered']
    %7 = vsyncpa [#allocation5], 0
    %8 = vsyncpa [#allocation3], 0
    %9 = vsyncpa [#allocation4], 0
    // Predicated region
    $region2: #{tpu_custom_call.1} parent=1 // pred_check
      _
    $region3: #{tpu_custom_call.1} parent=1 // pred_check_branch
      %11 = sbr.rel (0) target = $region5
    $region4: #{tpu_custom_call.1} parent=1 // pred_region
      %s13 = ssub.s32 16, 16
      %14 = vsyncadd [#allocation5], %s13
      %17 = dma.hbm_to_smem %s0, 16, [#allocation2], [#allocation5]
    $region5: #{tpu_custom_call.1} parent=1 // pred_fallthru
      _
    // Predicated region
    $region6: #{tpu_custom_call.1} parent=1 // pred_check
      _
    $region7: #{tpu_custom_call.1} parent=1 // pred_check_branch
      %19 = sbr.rel (0) target = $region9
    $region8: #{tpu_custom_call.1} parent=1 // pred_region
      %s21 = ssub.s32 256, 256
      %22 = vsyncadd [#allocation3], %s21
      %s23 = sshll.u32 [#allocation6], 4
      %s24 = int_to_ptr.vmem [resolvable:$true] %s23
      %29 = dma.hbm_to_vmem [thread:$0]  %s1, 256, %s24, [#allocation3], 128, 128, 8
    $region9: #{tpu_custom_call.1} parent=1 // pred_fallthru
      _
    // Predicated region
    $region10: #{tpu_custom_call.1} parent=1 // pred_check
      _
    $region11: #{tpu_custom_call.1} parent=1 // pred_check_branch
      %31 = sbr.rel (0) target = $region13
    $region12: #{tpu_custom_call.1} parent=1 // pred_region
      %32 = dma.done [#allocation5], 16
    $region13: #{tpu_custom_call.1} parent=1 // pred_fallthru
      _
    // Predicated region
    $region14: #{tpu_custom_call.1} parent=1 // pred_check
      _
    $region15: #{tpu_custom_call.1} parent=1 // pred_check_branch
      %34 = sbr.rel (0) target = $region17
    $region16: #{tpu_custom_call.1} parent=1 // pred_region
      %35 = dma.done [#allocation3], 256
    $region17: #{tpu_custom_call.1} parent=1 // pred_fallthru
      _
    %36 = sfence
    %s37 = sld [smem:[#allocation2]]
    %s38 = sld [smem:[#allocation2 + $0x1]]
    %v39 = vld [vmem:[#allocation6] sm:$0xff]
    %v40 = vld [vmem:[#allocation6 + $0x8] sm:$0xff]
    %v41 = vstv %s37
    %v42 = vsub.f32 %v39, %v41
    %v43 = vsub.f32 %v40, %v41
    %v44 = vmul.f32 %v42, %v42
    %v45 = vmul.f32 %v43, %v43
    %v46 = vstv %s38
    %v47 = vmul.f32 %v44, %v46
    %v48 = vmul.f32 %v45, %v46
    %v49 = vmul.f32 %v47, 1.442695
    %v50 = vpow.pop %v49
    %v51 = vmul.f32 %v48, 1.442695
    %v52 = vpow.pop %v51
    %53 = vst [vmem:[#allocation7] sm:$0xff] %v50
    %54 = vst [vmem:[#allocation7 + $0x8] sm:$0xff] %v52
    // Predicated region
    $region18: #{tpu_custom_call.1} parent=1 // pred_check
      _
    $region19: #{tpu_custom_call.1} parent=1 // pred_check_branch
      %56 = sbr.rel (0) target = $region21
    $region20: #{tpu_custom_call.1} parent=1 // pred_region
      %s58 = ssub.s32 256, 256
      %59 = vsyncadd [#allocation4], %s58
      %s60 = sshll.u32 [#allocation7], 4
      %s61 = int_to_ptr.vmem [resolvable:$true] %s60
      %66 = dma.vmem_to_hbm [thread:$0]  %s61, 256, %s2, [#allocation4], 128, 128, 8
    $region21: #{tpu_custom_call.1} parent=1 // pred_fallthru
      _
    // Predicated region
    $region22: #{tpu_custom_call.1} parent=1 // pred_check
      _
    $region23: #{tpu_custom_call.1} parent=1 // pred_check_branch
      %68 = sbr.rel (0) target = $region25
    $region24: #{tpu_custom_call.1} parent=1 // pred_region
      %69 = dma.done [#allocation4], 256
    $region25: #{tpu_custom_call.1} parent=1 // pred_fallthru
      _
    %70 = vsyncpa [#allocation3], 1
    %71 = vsyncpa [#allocation4], 1
    %72 = vsyncpa [#allocation5], 1

</llo_original>
